<compile_context>
chip_gen: v7x
topology: tpu7x:2x2x1
jax: 0.10.0
libtpu: 0.0.40
codegen_flags: <defaults>
</compile_context>

<pallas_src>
from functools import partial

import jax
import jax.numpy as jnp
from jax.experimental import pallas as pl
from jax.experimental.pallas import tpu as pltpu


# ----------------------------------------------------------------------------
# Forward hot path: counter read + in-place increment (the only compute
# forward() performs).  State lives in a (1,1) int32 buffer that is aliased
# input->output so the same HBM buffer is reused every call.
# ----------------------------------------------------------------------------
def _counter_kernel(cnt_ref, out_ref, next_ref):
    c = cnt_ref[0, 0]
    out_ref[0, 0] = c           # value returned by forward()
    next_ref[0, 0] = c + 1      # new module state (self.cnt += 1), in place


_counter_step = pl.pallas_call(
    _counter_kernel,
    out_shape=(
        jax.ShapeDtypeStruct((1, 1), jnp.int32),   # returned value
        jax.ShapeDtypeStruct((1, 1), jnp.int32),   # next state (aliases input 0)
    ),
    in_specs=[pl.BlockSpec(memory_space=pltpu.MemorySpace.SMEM)],
    out_specs=(
        pl.BlockSpec(memory_space=pltpu.MemorySpace.SMEM),
        pl.BlockSpec(memory_space=pltpu.MemorySpace.SMEM),
    ),
    input_output_aliases={0: 1},   # cnt input buffer -> next_ref output buffer
)


@partial(jax.jit, donate_argnums=(0,))
def _counter_forward(state):
    value, new_state = _counter_step(state)
    return value[0, 0], new_state


# ----------------------------------------------------------------------------
# 1x1 conv kernel (defined because __init__ defines nn.Conv2d(3, 3, 1); the
# original forward never calls it, and neither does OldStyleModel.forward).
# VPU broadcast-FMA formulation; H*W on the lane axis (lane-dense stores).
# ----------------------------------------------------------------------------
def _conv1x1_kernel(x_ref, w_ref, b_ref, o_ref):
    # x_ref: (1, Cin, HW) VMEM f32; w_ref: (Cout, Cin) SMEM; b_ref: (Cout,) SMEM
    cin = x_ref.shape[1]
    cout = o_ref.shape[1]
    x = x_ref[0]                                   # (Cin, HW)
    for co in range(cout):                         # static unroll (Cout=3)
        acc = x[0:1, :] * w_ref[co, 0]
        for k in range(1, cin):                    # static unroll (Cin=3)
            acc = acc + x[k:k + 1, :] * w_ref[co, k]
        o_ref[0, co:co + 1, :] = (acc + b_ref[co]).astype(o_ref.dtype)


@jax.jit
def conv1x1(x_nchw, weight, bias):
    """1x1 conv; x_nchw: (N, Cin, H, W); weight: (Cout, Cin, 1, 1); bias: (Cout,)."""
    n, c, h, w = x_nchw.shape
    cout = weight.shape[0]
    hw = h * w
    x3d = x_nchw.reshape(n, c, hw)        # free contiguous merge, no transpose
    w2d = weight.reshape(cout, c)         # (Cout, Cin) scalars for SMEM
    out3d = pl.pallas_call(
        _conv1x1_kernel,
        out_shape=jax.ShapeDtypeStruct((n, cout, hw), x_nchw.dtype),
        grid=(n,),
        in_specs=[
            pl.BlockSpec((1, c, hw), lambda i: (i, 0, 0)),
            pl.BlockSpec(memory_space=pltpu.MemorySpace.SMEM),
            pl.BlockSpec(memory_space=pltpu.MemorySpace.SMEM),
        ],
        out_specs=pl.BlockSpec((1, cout, hw), lambda i: (i, 0, 0)),
        compiler_params=pltpu.CompilerParams(
            dimension_semantics=("parallel",)),
    )(x3d, w2d, bias)
    return out3d.reshape(n, cout, h, w)   # free contiguous split back to NCHW


class OldStyleModel:
    """JAX/Pallas mirror of the PyTorch OldStyleModel."""

    def __init__(self):
        # nn.Conv2d(3, 3, 1) parameters, deterministically initialized.
        kw, kb = jax.random.split(jax.random.PRNGKey(42))
        fan_in = 3 * 1 * 1
        bound = 1.0 / (fan_in ** 0.5)
        self.conv_weight = jax.random.uniform(
            kw, (3, 3, 1, 1), jnp.float32, -bound, bound)
        self.conv_bias = jax.random.uniform(
            kb, (3,), jnp.float32, -bound, bound)
        # self.cnt = 0, kept as device state (int32 scalar), updated in place.
        self._cnt_state = jnp.zeros((1, 1), jnp.int32)

    def forward(self, *args, **kwargs):
        # Exactly matches PyTorch: ignore inputs, return [cnt], then cnt += 1.
        # No host sync here; the state buffer is donated and reused in place.
        value, new_state = _counter_forward(self._cnt_state)
        self._cnt_state = new_state
        return [value]

    __call__ = forward


if __name__ == "__main__":
    key = jax.random.PRNGKey(0)
    # Input consistent with the module's conv (3 input channels), NCHW.
    x = jax.random.normal(key, (2, 3, 16, 16), jnp.float32)

    model = OldStyleModel()

    # Sanity-check the (unused-by-forward) Pallas 1x1 conv against a JAX reference.
    y_kernel = conv1x1(x, model.conv_weight, model.conv_bias)
    y_ref = (
        jnp.einsum("nchw,oc->nohw", x, model.conv_weight.reshape(3, 3))
        + model.conv_bias.reshape(1, 3, 1, 1)
    )
    jax.block_until_ready(y_kernel)
    assert y_kernel.shape == (2, 3, 16, 16)
    assert jnp.allclose(y_kernel, y_ref, atol=1e-5, rtol=1e-5), "conv1x1 mismatch"

    # Forward-pass semantics: returns [0], then [1], then [2], ...
    # (forward() itself never syncs; we batch the host reads at the end.)
    r0 = model(x)
    r1 = model(x)
    r2 = model(x)
    jax.block_until_ready(r2[0])
    assert int(r0[0]) == 0 and int(r1[0]) == 1 and int(r2[0]) == 2, (r0, r1, r2)

    print("KERNEL_OK")
</pallas_src>

<mosaic_0001>
module attributes {stable_mosaic.version = 11 : i64} {
  func.func @_conv1x1_kernel(%arg0: i32, %arg1: memref<1x3x256xf32, #tpu.memory_space<vmem>>, %arg2: memref<3x3xf32, #tpu.memory_space<smem>>, %arg3: memref<3xf32, #tpu.memory_space<smem>>, %arg4: memref<1x3x256xf32, #tpu.memory_space<vmem>>) attributes {dimension_semantics = [#tpu.dimension_semantics<parallel>], iteration_bounds = array<i64: 2>, scalar_prefetch = 0 : i64, scratch_operands = 0 : i64, tpu.core_type = #tpu.core_type<tc>, window_params = [{transform_indices = @transform_0, window_bounds = array<i64: 1, 3, 256>}, {transform_indices = @transform_1, window_bounds = array<i64: 3, 3>}, {transform_indices = @transform_2, window_bounds = array<i64: 3>}, {transform_indices = @transform_3, window_bounds = array<i64: 1, 3, 256>}]} {
    %c0 = arith.constant 0 : index
    %c0_0 = arith.constant 0 : index
    %c0_1 = arith.constant 0 : index
    %0 = vector.load %arg1[%c0, %c0_0, %c0_1] : memref<1x3x256xf32, #tpu.memory_space<vmem>>, vector<1x3x256xf32>
    %1 = vector.shape_cast %0 : vector<1x3x256xf32> to vector<3x256xf32>
    %2 = vector.extract_strided_slice %1 {offsets = [0, 0], sizes = [1, 256], strides = [1, 1]} : vector<3x256xf32> to vector<1x256xf32>
    %c0_2 = arith.constant 0 : index
    %c0_3 = arith.constant 0 : index
    %3 = memref.load %arg2[%c0_2, %c0_3] : memref<3x3xf32, #tpu.memory_space<smem>>
    %4 = vector.broadcast %3 : f32 to vector<1x256xf32>
    %5 = arith.mulf %2, %4 : vector<1x256xf32>
    %6 = vector.extract_strided_slice %1 {offsets = [1, 0], sizes = [1, 256], strides = [1, 1]} : vector<3x256xf32> to vector<1x256xf32>
    %c0_4 = arith.constant 0 : index
    %c1 = arith.constant 1 : index
    %7 = memref.load %arg2[%c0_4, %c1] : memref<3x3xf32, #tpu.memory_space<smem>>
    %8 = vector.broadcast %7 : f32 to vector<1x256xf32>
    %9 = arith.mulf %6, %8 : vector<1x256xf32>
    %10 = arith.addf %5, %9 : vector<1x256xf32>
    %11 = vector.extract_strided_slice %1 {offsets = [2, 0], sizes = [1, 256], strides = [1, 1]} : vector<3x256xf32> to vector<1x256xf32>
    %c0_5 = arith.constant 0 : index
    %c2 = arith.constant 2 : index
    %12 = memref.load %arg2[%c0_5, %c2] : memref<3x3xf32, #tpu.memory_space<smem>>
    %13 = vector.broadcast %12 : f32 to vector<1x256xf32>
    %14 = arith.mulf %11, %13 : vector<1x256xf32>
    %15 = arith.addf %10, %14 : vector<1x256xf32>
    %c0_6 = arith.constant 0 : index
    %16 = memref.load %arg3[%c0_6] : memref<3xf32, #tpu.memory_space<smem>>
    %17 = vector.broadcast %16 : f32 to vector<1x256xf32>
    %18 = arith.addf %15, %17 : vector<1x256xf32>
    %c0_7 = arith.constant 0 : index
    %c0_8 = arith.constant 0 : index
    %c0_9 = arith.constant 0 : index
    %19 = vector.load %arg4[%c0_7, %c0_8, %c0_9] : memref<1x3x256xf32, #tpu.memory_space<vmem>>, vector<1x1x256xf32>
    %20 = vector.shape_cast %19 : vector<1x1x256xf32> to vector<1x256xf32>
    %21 = vector.shape_cast %18 : vector<1x256xf32> to vector<1x1x256xf32>
    tpu.vector_store %arg4[%c0_7, %c0_8, %c0_9], %21 {strides = array<i32>} : memref<1x3x256xf32, #tpu.memory_space<vmem>>, vector<1x1x256xf32>,
    %22 = vector.extract_strided_slice %1 {offsets = [0, 0], sizes = [1, 256], strides = [1, 1]} : vector<3x256xf32> to vector<1x256xf32>
    %c1_10 = arith.constant 1 : index
    %c0_11 = arith.constant 0 : index
    %23 = memref.load %arg2[%c1_10, %c0_11] : memref<3x3xf32, #tpu.memory_space<smem>>
    %24 = vector.broadcast %23 : f32 to vector<1x256xf32>
    %25 = arith.mulf %22, %24 : vector<1x256xf32>
    %26 = vector.extract_strided_slice %1 {offsets = [1, 0], sizes = [1, 256], strides = [1, 1]} : vector<3x256xf32> to vector<1x256xf32>
    %c1_12 = arith.constant 1 : index
    %c1_13 = arith.constant 1 : index
    %27 = memref.load %arg2[%c1_12, %c1_13] : memref<3x3xf32, #tpu.memory_space<smem>>
    %28 = vector.broadcast %27 : f32 to vector<1x256xf32>
    %29 = arith.mulf %26, %28 : vector<1x256xf32>
    %30 = arith.addf %25, %29 : vector<1x256xf32>
    %31 = vector.extract_strided_slice %1 {offsets = [2, 0], sizes = [1, 256], strides = [1, 1]} : vector<3x256xf32> to vector<1x256xf32>
    %c1_14 = arith.constant 1 : index
    %c2_15 = arith.constant 2 : index
    %32 = memref.load %arg2[%c1_14, %c2_15] : memref<3x3xf32, #tpu.memory_space<smem>>
    %33 = vector.broadcast %32 : f32 to vector<1x256xf32>
    %34 = arith.mulf %31, %33 : vector<1x256xf32>
    %35 = arith.addf %30, %34 : vector<1x256xf32>
    %c1_16 = arith.constant 1 : index
    %36 = memref.load %arg3[%c1_16] : memref<3xf32, #tpu.memory_space<smem>>
    %37 = vector.broadcast %36 : f32 to vector<1x256xf32>
    %38 = arith.addf %35, %37 : vector<1x256xf32>
    %c0_17 = arith.constant 0 : index
    %c1_18 = arith.constant 1 : index
    %c0_19 = arith.constant 0 : index
    %39 = vector.load %arg4[%c0_17, %c1_18, %c0_19] : memref<1x3x256xf32, #tpu.memory_space<vmem>>, vector<1x1x256xf32>
    %40 = vector.shape_cast %39 : vector<1x1x256xf32> to vector<1x256xf32>
    %41 = vector.shape_cast %38 : vector<1x256xf32> to vector<1x1x256xf32>
    tpu.vector_store %arg4[%c0_17, %c1_18, %c0_19], %41 {strides = array<i32>} : memref<1x3x256xf32, #tpu.memory_space<vmem>>, vector<1x1x256xf32>,
    %42 = vector.extract_strided_slice %1 {offsets = [0, 0], sizes = [1, 256], strides = [1, 1]} : vector<3x256xf32> to vector<1x256xf32>
    %c2_20 = arith.constant 2 : index
    %c0_21 = arith.constant 0 : index
    %43 = memref.load %arg2[%c2_20, %c0_21] : memref<3x3xf32, #tpu.memory_space<smem>>
    %44 = vector.broadcast %43 : f32 to vector<1x256xf32>
    %45 = arith.mulf %42, %44 : vector<1x256xf32>
    %46 = vector.extract_strided_slice %1 {offsets = [1, 0], sizes = [1, 256], strides = [1, 1]} : vector<3x256xf32> to vector<1x256xf32>
    %c2_22 = arith.constant 2 : index
    %c1_23 = arith.constant 1 : index
    %47 = memref.load %arg2[%c2_22, %c1_23] : memref<3x3xf32, #tpu.memory_space<smem>>
    %48 = vector.broadcast %47 : f32 to vector<1x256xf32>
    %49 = arith.mulf %46, %48 : vector<1x256xf32>
    %50 = arith.addf %45, %49 : vector<1x256xf32>
    %51 = vector.extract_strided_slice %1 {offsets = [2, 0], sizes = [1, 256], strides = [1, 1]} : vector<3x256xf32> to vector<1x256xf32>
    %c2_24 = arith.constant 2 : index
    %c2_25 = arith.constant 2 : index
    %52 = memref.load %arg2[%c2_24, %c2_25] : memref<3x3xf32, #tpu.memory_space<smem>>
    %53 = vector.broadcast %52 : f32 to vector<1x256xf32>
    %54 = arith.mulf %51, %53 : vector<1x256xf32>
    %55 = arith.addf %50, %54 : vector<1x256xf32>
    %c2_26 = arith.constant 2 : index
    %56 = memref.load %arg3[%c2_26] : memref<3xf32, #tpu.memory_space<smem>>
    %57 = vector.broadcast %56 : f32 to vector<1x256xf32>
    %58 = arith.addf %55, %57 : vector<1x256xf32>
    %c0_27 = arith.constant 0 : index
    %c2_28 = arith.constant 2 : index
    %c0_29 = arith.constant 0 : index
    %59 = vector.load %arg4[%c0_27, %c2_28, %c0_29] : memref<1x3x256xf32, #tpu.memory_space<vmem>>, vector<1x1x256xf32>
    %60 = vector.shape_cast %59 : vector<1x1x256xf32> to vector<1x256xf32>
    %61 = vector.shape_cast %58 : vector<1x256xf32> to vector<1x1x256xf32>
    tpu.vector_store %arg4[%c0_27, %c2_28, %c0_29], %61 {strides = array<i32>} : memref<1x3x256xf32, #tpu.memory_space<vmem>>, vector<1x1x256xf32>,
    return
  }
  func.func @transform_0(%arg0: i32) -> (i32, i32, i32) {
    %c0_i32 = arith.constant 0 : i32
    %c0_i32_0 = arith.constant 0 : i32
    %c0_i32_1 = arith.constant 0 : i32
    return %arg0, %c0_i32, %c0_i32_0 : i32, i32, i32
  }
  func.func @transform_1(%arg0: i32) -> (i32, i32) {
    %c0_i32 = arith.constant 0 : i32
    %c0_i32_0 = arith.constant 0 : i32
    %c0_i32_1 = arith.constant 0 : i32
    return %c0_i32, %c0_i32_0 : i32, i32
  }
  func.func @transform_2(%arg0: i32) -> i32 {
    %c0_i32 = arith.constant 0 : i32
    %c0_i32_0 = arith.constant 0 : i32
    return %c0_i32 : i32
  }
  func.func @transform_3(%arg0: i32) -> (i32, i32, i32) {
    %c0_i32 = arith.constant 0 : i32
    %c0_i32_0 = arith.constant 0 : i32
    %c0_i32_1 = arith.constant 0 : i32
    return %arg0, %c0_i32, %c0_i32_0 : i32, i32, i32
  }
}

</mosaic_0001>

<llo_original>
// kernel: conv1x1.1
$region0: #{conv1x1.1}
  #allocation0 [shape = 'u32[]', space=smem, size = 0x4, offset = 0x4, fixed_abs, tag = 'smem constant byte address 0x4 - core index']
  #allocation1 [shape = 'u32[144,128]{1,0:T(1,128)}', space=vmem, size = 0x12000, scoped, tag = 'internal scratch']
  %s0 = inlined_call_operand.vmem [shape: f32[2,3,256], index: 0, kind: input, shape index: {}]
  %s1 = inlined_call_operand.vmem [shape: f32[3,3], index: 1, kind: input, shape index: {}]
  %s2 = inlined_call_operand.vmem [shape: f32[3], index: 2, kind: input, shape index: {}]
  %s3 = inlined_call_operand.vmem [shape: f32[2,3,256], index: 3, kind: output, shape index: {}]
  %s4 = sld [smem:[#allocation0]]
  $region53: #{conv1x1.1} parent=0
    _
  %s6 = ssub.s32 1, %s4
  %s7 = scalar_select 0, %s6, %s4
  $region1: #{conv1x1.1} parent=0
    #allocation2 [shape = 'u8[2048]{0}', space=smem, size = 0x800, scoped, tag = 'input window, operand 1, single buffered']
    #allocation3 [shape = 's32[2]{0}', space=sflag, size = 0x8, scoped, tag = 'scoped memory for conv1x1.1']
    #allocation4 [shape = 'u8[512]{0}', space=smem, size = 0x200, scoped, tag = 'input window, operand 2, single buffered']
    #allocation5 [shape = 's32[1]{0}', space=sflag, size = 0x4, scoped, tag = 'scoped memory for conv1x1.1']
    %8 = vsyncpa [#allocation3], 0
    %9 = vsyncpa [#allocation5], 0
    loop: start=0, step=1, limit=4
    $region2: #{conv1x1.1} parent=1 // loop_pre_header
      _
    $region3: #{conv1x1.1} parent=1 // loop_header
      %s11 = sphi 0, %s15
      %p12 = scmp.ge.s32.totalorder %s11, 4
      %s21 = sphi 0, %s23
      %s24 = sphi 0, %s21
      %s25 = sphi 0, %s24
      %s41 = sphi 0, %s25
      %s45 = sphi 0, %s45
      %s47 = sphi 0, %s45
      %s48 = sphi 0, %s47
      %s62 = sphi 0, %s48
      %s66 = sphi 0, %s66
      %s68 = sphi 0, %s66
      %s69 = sphi 0, %s68
      %s83 = sphi 0, %s69
      %s89 = sphi 0, %s91
      %s92 = sphi 0, %s89
      %s93 = sphi 0, %s92
      %s109 = sphi 0, %s93
    $region4: #{conv1x1.1} parent=1 // loop_header_branch
      %14 = sbr.rel (%p12) target = $region8
    $region5: #{conv1x1.1} parent=1 // loop_body
      %s16 = ssub.s32 %s11, 1
      %s17 = ssub.s32 %s11, 2
      %s18 = sadd.s32 %s11, 1
      %s19 = ssub.s32 %s11, %s18
      %p20 = scmp.eq.s32.totalorder %s19, 0
      %s22 = sadd.s32 %s21, 1
      %s23 = scalar_select %p20, %s21, %s22
      %p26 = pneg %p20
      %p27 = scmp.eq.s32.totalorder %s11, 1
      %p28 = por %p26, %p27
      %p29 = scmp.ne.s32.totalorder %s21, %s24
      %p30 = scmp.eq.s32.totalorder %s11, 0
      %p31 = por %p29, %p30
      %p32 = scmp.ne.s32.totalorder %s21, %s24
      %p33 = scmp.eq.s32.totalorder %s16, 1
      %p34 = por %p32, %p33
      %p35 = scmp.ne.s32.totalorder %s24, %s25
      %p36 = scmp.eq.s32.totalorder %s16, 0
      %p37 = por %p35, %p36
      %p38 = scmp.ne.s32.totalorder %s24, %s25
      %p39 = scmp.eq.s32.totalorder %s17, 1
      %p40 = por %p38, %p39
      %p42 = scmp.ne.s32.totalorder %s25, %s41
      %p43 = scmp.eq.s32.totalorder %s17, 0
      %p44 = por %p42, %p43
      %s46 = sadd.s32 %s45, 1
      %p49 = scmp.eq.s32.totalorder %s11, 1
      %p50 = scmp.ne.s32.totalorder %s45, %s47
      %p51 = scmp.eq.s32.totalorder %s11, 0
      %p52 = por %p50, %p51
      %p53 = scmp.ne.s32.totalorder %s45, %s47
      %p54 = scmp.eq.s32.totalorder %s16, 1
      %p55 = por %p53, %p54
      %p56 = scmp.ne.s32.totalorder %s47, %s48
      %p57 = scmp.eq.s32.totalorder %s16, 0
      %p58 = por %p56, %p57
      %p59 = scmp.ne.s32.totalorder %s47, %s48
      %p60 = scmp.eq.s32.totalorder %s17, 1
      %p61 = por %p59, %p60
      %p63 = scmp.ne.s32.totalorder %s48, %s62
      %p64 = scmp.eq.s32.totalorder %s17, 0
      %p65 = por %p63, %p64
      %s67 = sadd.s32 %s66, 1
      %p70 = scmp.eq.s32.totalorder %s11, 1
      %p71 = scmp.ne.s32.totalorder %s66, %s68
      %p72 = scmp.eq.s32.totalorder %s11, 0
      %p73 = por %p71, %p72
      %p74 = scmp.ne.s32.totalorder %s66, %s68
      %p75 = scmp.eq.s32.totalorder %s16, 1
      %p76 = por %p74, %p75
      %p77 = scmp.ne.s32.totalorder %s68, %s69
      %p78 = scmp.eq.s32.totalorder %s16, 0
      %p79 = por %p77, %p78
      %p80 = scmp.ne.s32.totalorder %s68, %s69
      %p81 = scmp.eq.s32.totalorder %s17, 1
      %p82 = por %p80, %p81
      %p84 = scmp.ne.s32.totalorder %s69, %s83
      %p85 = scmp.eq.s32.totalorder %s17, 0
      %p86 = por %p84, %p85
      %s87 = ssub.s32 %s11, %s18
      %p88 = scmp.eq.s32.totalorder %s87, 0
      %s90 = sadd.s32 %s89, 1
      %s91 = scalar_select %p88, %s89, %s90
      %p94 = pneg %p88
      %p95 = scmp.eq.s32.totalorder %s11, 1
      %p96 = por %p94, %p95
      %p97 = scmp.ne.s32.totalorder %s89, %s92
      %p98 = scmp.eq.s32.totalorder %s11, 0
      %p99 = por %p97, %p98
      %p100 = scmp.ne.s32.totalorder %s89, %s92
      %p101 = scmp.eq.s32.totalorder %s16, 1
      %p102 = por %p100, %p101
      %p103 = scmp.ne.s32.totalorder %s92, %s93
      %p104 = scmp.eq.s32.totalorder %s16, 0
      %p105 = por %p103, %p104
      %p106 = scmp.ne.s32.totalorder %s92, %s93
      %p107 = scmp.eq.s32.totalorder %s17, 1
      %p108 = por %p106, %p107
      %p110 = scmp.ne.s32.totalorder %s93, %s109
      %p111 = scmp.eq.s32.totalorder %s17, 0
      %p112 = por %p110, %p111
      %p113 = scmp.le.s32.totalorder 1, %s11
      %p114 = scmp.lt.s32.totalorder %s11, 3
      %p115 = pnand %p113, %p114
      %p116 = pneg %p115
      // Predicated region
      $region9: #{conv1x1.1} parent=5 // pred_check
        _
      $region10: #{conv1x1.1} parent=5 // pred_check_branch
        %118 = sbr.rel (%p115) target = $region12
      $region11: #{conv1x1.1} parent=5 // pred_region
        %s119 = ssub.s32 %s11, 1
        // Predicated region
        $region13: #{conv1x1.1} parent=11 // pred_check
          %p120 = pneg %p58
        $region14: #{conv1x1.1} parent=11 // pred_check_branch
          %122 = sbr.rel (%p120) target = $region16
        $region15: #{conv1x1.1} parent=11 // pred_region
          %s124 = ssub.s32 64, 64
          %125 = vsyncadd [#allocation3], %s124
          %s127 = sshll.u32 %s1, 4
          %s128 = int_to_ptr.vmem [resolvable:$true] %s127
          %130 = dma.vmem_to_smem %s128, 64, [#allocation2], [#allocation3]
        $region16: #{conv1x1.1} parent=11 // pred_fallthru
          _
        // Predicated region
        $region17: #{conv1x1.1} parent=11 // pred_check
          %p131 = pneg %p79
        $region18: #{conv1x1.1} parent=11 // pred_check_branch
          %133 = sbr.rel (%p131) target = $region20
        $region19: #{conv1x1.1} parent=11 // pred_region
          %s135 = ssub.s32 16, 16
          %136 = vsyncadd [#allocation5], %s135
          %s138 = sshll.u32 %s2, 4
          %s139 = int_to_ptr.vmem [resolvable:$true] %s138
          %141 = dma.vmem_to_smem %s139, 16, [#allocation4], [#allocation5]
        $region20: #{conv1x1.1} parent=11 // pred_fallthru
          _
      $region12: #{conv1x1.1} parent=5 // pred_fallthru
        _
      %p142 = scmp.lt.s32.totalorder %s11, 2
      // Predicated region
      $region21: #{conv1x1.1} parent=5 // pred_check
        %p143 = pneg %p142
      $region22: #{conv1x1.1} parent=5 // pred_check_branch
        %145 = sbr.rel (%p143) target = $region24
      $region23: #{conv1x1.1} parent=5 // pred_region
        // Predicated region
        $region25: #{conv1x1.1} parent=23 // pred_check
          %p146 = pneg %p31
        $region26: #{conv1x1.1} parent=23 // pred_check_branch
          %148 = sbr.rel (%p146) target = $region28
        $region27: #{conv1x1.1} parent=23 // pred_region
          %p149 = scmp.lt.s32.totalorder %s11, 1
          %s150 = scalar_select %p149, %s11, 1
          %s151 = smul.addr %s150, 2
          %s152 = smul.addr %s151, 4
          %s153 = scalar_lea.vmem %s0, %s152
        $region28: #{conv1x1.1} parent=23 // pred_fallthru
          _
      $region24: #{conv1x1.1} parent=5 // pred_fallthru
        _
      %p154 = scmp.le.s32.totalorder 1, %s11
      %p155 = scmp.lt.s32.totalorder %s11, 3
      %p156 = pnand %p154, %p155
      %p157 = pneg %p156
      // Predicated region
      $region29: #{conv1x1.1} parent=5 // pred_check
        _
      $region30: #{conv1x1.1} parent=5 // pred_check_branch
        %159 = sbr.rel (%p156) target = $region32
      $region31: #{conv1x1.1} parent=5 // pred_region
        %s160 = ssub.s32 %s11, 1
        // Predicated region
        $region33: #{conv1x1.1} parent=31 // pred_check
          %p161 = pneg %p58
        $region34: #{conv1x1.1} parent=31 // pred_check_branch
          %163 = sbr.rel (%p161) target = $region36
        $region35: #{conv1x1.1} parent=31 // pred_region
          %164 = dma.done [#allocation3], 64
        $region36: #{conv1x1.1} parent=31 // pred_fallthru
          _
        // Predicated region
        $region37: #{conv1x1.1} parent=31 // pred_check
          %p165 = pneg %p79
        $region38: #{conv1x1.1} parent=31 // pred_check_branch
          %167 = sbr.rel (%p165) target = $region40
        $region39: #{conv1x1.1} parent=31 // pred_region
          %168 = dma.done [#allocation5], 16
        $region40: #{conv1x1.1} parent=31 // pred_fallthru
          _
        %169 = sfence
        %p170 = scmp.lt.s32.totalorder %s16, 1
        %s171 = scalar_select %p170, %s16, 1
        %s172 = smul.addr %s171, 2
        %s173 = smul.addr %s172, 4
        %s174 = scalar_lea.vmem %s0, %s173
        %p175 = pneg %p37
        %p176 = pneg %p34
        %p177 = pneg %p58
        %p178 = pneg %p55
        %p179 = pneg %p79
        %p180 = pneg %p76
        %p181 = pneg %p105
        %p182 = pneg %p102
        %p183 = scmp.lt.s32.totalorder %s16, 1
        %s184 = scalar_select %p183, %s16, 1
        %s185 = smul.addr %s184, 2
        %s186 = smul.addr %s185, 4
        %s187 = scalar_lea.vmem %s3, %s186
        %p188 = scmp.lt.s32.totalorder %s16, 1
        %s189 = scalar_select %p188, %s16, 1
        %s190 = smul.addr %s189, 2
        %s191 = smul.addr %s190, 4
        %s192 = scalar_lea.vmem %s0, %s191
        %p193 = scmp.lt.s32.totalorder %s16, 1
        %s194 = scalar_select %p193, %s16, 1
        %s195 = smul.addr %s194, 2
        %s196 = smul.addr %s195, 4
        %s197 = scalar_lea.vmem %s3, %s196
        %v198 = vld [vmem:[%s192] sm:$0x77]
        %s199 = sld [smem:[#allocation2]]
        %v200 = vstv %s199
        %v201 = vmul.f32 %v198, %v200
        %s202 = sld [smem:[#allocation2 + $0x1]]
        %v203 = vstv %s202
        %v204 = vmul.f32 %v198, %v203
        %v206 = vrot.slane %v204, 5
        %v207 = vrot.slane %v206, 4
        %v209 = vadd.f32 %v201, %v207
        %s210 = sld [smem:[#allocation2 + $0x2]]
        %v211 = vstv %s210
        %v212 = vmul.f32 %v198, %v211
        %v214 = vrot.slane %v212, 6
        %v215 = vrot.slane %v214, 4
        %v217 = vadd.f32 %v209, %v215
        %s218 = sld [smem:[#allocation4]]
        %v219 = vstv %s218
        %v220 = vadd.f32 %v217, %v219
        %v223 = vunpack.c.l.s4 1966171168
        %v224 = vunpack.c.0.s8 %v223
        %v225 = vlaneseq
        %v226 = vshrl.u32 %v225, 7
        %v227 = vsub.s32 %v224, %v226
        %v228 = vrot.slane %v220, %v227
        %v230 = vunpack.c.l.s4 1966171168
        %v231 = vunpack.c.0.s8 %v230
        %v232 = vlaneseq
        %v233 = vshrl.u32 %v232, 7
        %v234 = vsub.s32 %v231, %v233
        %v235 = vrot.slane %v228, %v234
        %v237 = vlaneseq
        %vm238 = vcmp.ge.s32.totalorder %v237, 0
        %vm239 = vcmp.lt.s32.totalorder %v237, 256
        %vm240 = vmand %vm238, %vm239
        %241 = vst.msk [vmem:[%s197] ss:$4 sm:$0x3] %vm240, %v235
        %s242 = sld [smem:[#allocation2 + $0x80]]
        %v243 = vstv %s242
        %v244 = vmul.f32 %v198, %v243
        %s245 = sld [smem:[#allocation2 + $0x81]]
        %v246 = vstv %s245
        %v247 = vmul.f32 %v198, %v246
        %v249 = vrot.slane %v247, 5
        %v250 = vrot.slane %v249, 4
        %v252 = vadd.f32 %v244, %v250
        %s253 = sld [smem:[#allocation2 + $0x82]]
        %v254 = vstv %s253
        %v255 = vmul.f32 %v198, %v254
        %v257 = vrot.slane %v255, 6
        %v258 = vrot.slane %v257, 4
        %v260 = vadd.f32 %v252, %v258
        %s261 = sld [smem:[#allocation4 + $0x1]]
        %v262 = vstv %s261
        %v263 = vadd.f32 %v260, %v262
        %v266 = vunpack.c.l.s4 1966171168
        %v267 = vunpack.c.0.s8 %v266
        %v268 = vlaneseq
        %v269 = vshrl.u32 %v268, 7
        %v270 = vsub.s32 %v267, %v269
        %v271 = vrot.slane %v263, %v270
        %v273 = vunpack.c.l.s4 1966171168
        %v274 = vunpack.c.0.s8 %v273
        %v275 = vlaneseq
        %v276 = vshrl.u32 %v275, 7
        %v277 = vsub.s32 %v274, %v276
        %v278 = vrot.slane %v271, %v277
        %s280 = scalar_lea.vmem %s197, 1
        %281 = vst.msk [vmem:[%s280] ss:$4 sm:$0x3] %vm240, %v278
        %s282 = sld [smem:[#allocation2 + $0x100]]
        %v283 = vstv %s282
        %v284 = vmul.f32 %v198, %v283
        %s285 = sld [smem:[#allocation2 + $0x101]]
        %v286 = vstv %s285
        %v287 = vmul.f32 %v198, %v286
        %v289 = vrot.slane %v287, 5
        %v290 = vrot.slane %v289, 4
        %v292 = vadd.f32 %v284, %v290
        %s293 = sld [smem:[#allocation2 + $0x102]]
        %v294 = vstv %s293
        %v295 = vmul.f32 %v198, %v294
        %v297 = vrot.slane %v295, 6
        %v298 = vrot.slane %v297, 4
        %v300 = vadd.f32 %v292, %v298
        %s301 = sld [smem:[#allocation4 + $0x2]]
        %v302 = vstv %s301
        %v303 = vadd.f32 %v300, %v302
        %v306 = vunpack.c.l.s4 1966171168
        %v307 = vunpack.c.0.s8 %v306
        %v308 = vlaneseq
        %v309 = vshrl.u32 %v308, 7
        %v310 = vsub.s32 %v307, %v309
        %v311 = vrot.slane %v303, %v310
        %v313 = vunpack.c.l.s4 1966171168
        %v314 = vunpack.c.0.s8 %v313
        %v315 = vlaneseq
        %v316 = vshrl.u32 %v315, 7
        %v317 = vsub.s32 %v314, %v316
        %v318 = vrot.slane %v311, %v317
        %s320 = scalar_lea.vmem %s197, 2
        %321 = vst.msk [vmem:[%s320] ss:$4 sm:$0x3] %vm240, %v318
        %p322 = scmp.lt.s32.totalorder %s16, 1
        %s323 = scalar_select %p322, %s16, 1
        %s324 = smul.addr %s323, 2
        %s325 = smul.addr %s324, 4
        %s326 = scalar_lea.vmem %s3, %s325
        // Predicated region
        $region41: #{conv1x1.1} parent=31 // pred_check
          %p327 = pneg %p102
        $region42: #{conv1x1.1} parent=31 // pred_check_branch
          %329 = sbr.rel (%p327) target = $region44
        $region43: #{conv1x1.1} parent=31 // pred_region
          _
        $region44: #{conv1x1.1} parent=31 // pred_fallthru
          _
      $region32: #{conv1x1.1} parent=5 // pred_fallthru
        _
      %p330 = scmp.le.s32.totalorder 2, %s11
      // Predicated region
      $region45: #{conv1x1.1} parent=5 // pred_check
        %p331 = pneg %p330
      $region46: #{conv1x1.1} parent=5 // pred_check_branch
        %333 = sbr.rel (%p331) target = $region48
      $region47: #{conv1x1.1} parent=5 // pred_region
        %s334 = ssub.s32 %s11, 2
        // Predicated region
        $region49: #{conv1x1.1} parent=47 // pred_check
          %p335 = pneg %p108
        $region50: #{conv1x1.1} parent=47 // pred_check_branch
          %337 = sbr.rel (%p335) target = $region52
        $region51: #{conv1x1.1} parent=47 // pred_region
          %p338 = scmp.lt.s32.totalorder %s17, 1
          %s339 = scalar_select %p338, %s17, 1
          %s340 = smul.addr %s339, 2
          %s341 = smul.addr %s340, 4
          %s342 = scalar_lea.vmem %s3, %s341
        $region52: #{conv1x1.1} parent=47 // pred_fallthru
          _
      $region48: #{conv1x1.1} parent=5 // pred_fallthru
        _
    $region6: #{conv1x1.1} parent=1 // loop_footer
      %s15 = sadd.s32 1, %s11
    $region7: #{conv1x1.1} parent=1 // loop_footer_branch
      %10 = sbr.rel target = $region3
    $region8: #{conv1x1.1} parent=1 // loop_exit
      _
    %343 = vsyncpa [#allocation3], 1
    %s344 = scalar_lea.sflag [#allocation3], 1
    %345 = vsyncpa %s344, 1
    %346 = vsyncpa [#allocation5], 1

</llo_original>
